<compile_context>
chip_gen: v7x
topology: tpu7x:2x2x1
jax: 0.10.0
libtpu: 0.0.40
codegen_flags: <defaults>
</compile_context>

<pallas_src>
import jax
import jax.numpy as jnp
from jax import lax
from jax.experimental import pallas as pl
from jax.experimental.pallas import tpu as pltpu


HIDDEN = 64            # args.hidden_size
IN_DIM = 2 * HIDDEN    # dense input dim = hidden_size * 2 = 128
OUT_DIM = 1            # decoder output dim


def _decoder_kernel(x_ref, w1t_ref, b1_ref, w2_ref, b2_ref, o_ref):
    # x_ref:   (TM, 128) f32   one tile of flattened (B*L) rows (streamed f32)
    # w1t_ref: (128, 64) bf16  dense weight, pre-transposed to (in, out)
    # b1_ref:  (1, 64)   f32
    # w2_ref:  (1, 64)   bf16  decoder weight, native torch (out, in) layout
    # b2_ref:  (1, 1)    f32
    # o_ref:   (1, TM)   f32   lane-dense output row
    xb = x_ref[...].astype(jnp.bfloat16)                      # VPU cast, hidden under DMA
    h = jnp.dot(xb, w1t_ref[...],
                preferred_element_type=jnp.float32)           # (TM, 64), canonical MXU matmul
    h = jnp.maximum(h + b1_ref[...], 0.0)                     # bias + ReLU in f32
    hb = h.astype(jnp.bfloat16)                               # bf16 for 2nd dot (v5e MXU, 1/2 relayout bytes)
    out_t = lax.dot_general(
        w2_ref[...], hb,
        dimension_numbers=(((1,), (1,)), ((), ())),
        preferred_element_type=jnp.float32)                   # (1, TM) lane-dense
    o_ref[...] = (out_t + b2_ref[...]).astype(o_ref.dtype)


def bytenet_decoder2(features, w1, b1, w2, b2, *, tile_rows=8192):
    """features: (B, L, 2H) float32 (or bf16).  Returns (B, L, 1) float32.

    w1: (H, 2H), b1: (H,)  -- torch.nn.Linear(2H, H) layout
    w2: (1, H),  b2: (1,)  -- torch.nn.Linear(H, 1)  layout
    """
    B, L, C = features.shape
    assert C == IN_DIM
    rows = B * L

    # ---- tile sizing -------------------------------------------------------
    # Multiple of 128 (lane-dense output blocks); default 8192 rows (~4 MiB of
    # f32 input per buffer); hard cap 32768 (only sensible on 128-MiB-VMEM
    # parts -- v5e/v6e).  For large inputs keep >= 2 tiles so both v7x
    # TensorCores get work; never larger than the 128-rounded problem.
    tile_rows = max(128, (int(tile_rows) // 128) * 128)
    tile_rows = min(tile_rows, 32 * 1024)
    if rows >= 2048:
        tile_rows = min(tile_rows, pl.cdiv(pl.cdiv(rows, 2), 128) * 128)
    tile_rows = min(tile_rows, pl.cdiv(rows, 128) * 128)

    num_tiles = pl.cdiv(rows, tile_rows)
    rows_padded = num_tiles * tile_rows

    # Flatten only (free for a contiguous array); no astype, no pad -> the
    # kernel reads the f32 features exactly once from HBM.
    x2d = features.reshape(rows, C)
    if rows < tile_rows:
        # Degenerate small-input case only: pad once so the single block is
        # fully in-bounds.  Large inputs never hit this; their ragged last
        # tile is handled by the cdiv grid (tail rows are sliced off below).
        x2d = jnp.pad(x2d, ((0, tile_rows - rows), (0, 0)))

    # Weights: w1 pre-transposed to (IN_DIM, HIDDEN) in bf16 (one-time 16 KiB);
    # small operands as 2-D rows.
    w1t = jnp.asarray(w1, dtype=jnp.bfloat16).T                   # (128, 64)
    b1_r = jnp.asarray(b1, dtype=jnp.float32).reshape(1, HIDDEN)
    w2_r = jnp.asarray(w2, dtype=jnp.bfloat16).reshape(1, HIDDEN)
    b2_r = jnp.asarray(b2, dtype=jnp.float32).reshape(1, OUT_DIM)

    # VMEM working set per tile ~ 1.8 KiB/row (2x double-buffered f32 x tile +
    # in-kernel bf16 x / f32 h / bf16 h(+h^T) + output row).  Scale the scoped
    # VMEM limit with the tile; <= 48 MiB keeps v7x (64 MiB physical) safe,
    # larger values only kick in for caller-requested huge tiles on v5e/v6e.
    vmem_limit = int(min(112 << 20, max(48 << 20, tile_rows * 3 * 1024)))

    out_row = pl.pallas_call(
        _decoder_kernel,
        out_shape=jax.ShapeDtypeStruct((1, rows_padded), jnp.float32),
        grid_spec=pltpu.PrefetchScalarGridSpec(
            num_scalar_prefetch=0,
            grid=(num_tiles,),
            in_specs=[
                pl.BlockSpec((tile_rows, IN_DIM), lambda i: (i, 0)),
                pl.BlockSpec((IN_DIM, HIDDEN), lambda i: (0, 0)),
                pl.BlockSpec((1, HIDDEN), lambda i: (0, 0)),
                pl.BlockSpec((1, HIDDEN), lambda i: (0, 0)),
                pl.BlockSpec((1, OUT_DIM), lambda i: (0, 0)),
            ],
            out_specs=pl.BlockSpec((1, tile_rows), lambda i: (0, i)),
        ),
        compiler_params=pltpu.CompilerParams(
            dimension_semantics=("parallel",),
            vmem_limit_bytes=vmem_limit),
    )(x2d, w1t, b1_r, w2_r, b2_r)

    # Drop pad columns and restore (B, L, 1). Pure layout plumbing (tiny).
    return out_row[0, :rows].reshape(B, L, OUT_DIM)


def _init_linear(key, out_features, in_features):
    """Deterministic init mimicking torch.nn.Linear default (uniform +-1/sqrt(fan_in))."""
    kw, kb = jax.random.split(key)
    bound = 1.0 / (in_features ** 0.5)
    w = jax.random.uniform(kw, (out_features, in_features),
                           minval=-bound, maxval=bound, dtype=jnp.float32)
    b = jax.random.uniform(kb, (out_features,),
                           minval=-bound, maxval=bound, dtype=jnp.float32)
    return w, b


if __name__ == "__main__":
    key = jax.random.PRNGKey(0)
    k_feat, k_dense, k_dec = jax.random.split(key, 3)

    # Small shapes consistent with the module: batch=2, seq=8, hidden_size=64.
    B, L = 2, 8
    features = jax.random.normal(k_feat, (B, L, IN_DIM), dtype=jnp.float32)

    w1, b1 = _init_linear(k_dense, HIDDEN, IN_DIM)   # dense:   Linear(128 -> 64)
    w2, b2 = _init_linear(k_dec, OUT_DIM, HIDDEN)    # decoder: Linear(64 -> 1)

    out = bytenet_decoder2(features, w1, b1, w2, b2)
    out = jax.block_until_ready(out)

    # Pure-JAX f32 reference of the same math.  The kernel computes both
    # matmuls with bf16 operands (f32 accumulate), hence the loosened tolerance.
    ref = jnp.maximum(features @ w1.T + b1, 0.0) @ w2.T + b2
    assert out.shape == (B, L, 1)
    assert jnp.allclose(out, ref, atol=3e-2, rtol=3e-2), (
        float(jnp.max(jnp.abs(out - ref))))

    print("KERNEL_OK")
</pallas_src>

<mosaic_0001>
module attributes {stable_mosaic.version = 11 : i64} {
  func.func @_decoder_kernel(%arg0: i32, %arg1: memref<128x128xf32, #tpu.memory_space<vmem>>, %arg2: memref<128x64xbf16, #tpu.memory_space<vmem>>, %arg3: memref<1x64xf32, #tpu.memory_space<vmem>>, %arg4: memref<1x64xbf16, #tpu.memory_space<vmem>>, %arg5: memref<1x1xf32, #tpu.memory_space<vmem>>, %arg6: memref<1x128xf32, #tpu.memory_space<vmem>>) attributes {dimension_semantics = [#tpu.dimension_semantics<parallel>], iteration_bounds = array<i64: 1>, scalar_prefetch = 0 : i64, scratch_operands = 0 : i64, tpu.core_type = #tpu.core_type<tc>, window_params = [{transform_indices = @transform_0, window_bounds = array<i64: 128, 128>}, {pipeline_mode = #tpu.pipeline_mode<synchronous>, transform_indices = @transform_1, window_bounds = array<i64: 128, 64>}, {pipeline_mode = #tpu.pipeline_mode<synchronous>, transform_indices = @transform_2, window_bounds = array<i64: 1, 64>}, {pipeline_mode = #tpu.pipeline_mode<synchronous>, transform_indices = @transform_3, window_bounds = array<i64: 1, 64>}, {pipeline_mode = #tpu.pipeline_mode<synchronous>, transform_indices = @transform_4, window_bounds = array<i64: 1, 1>}, {transform_indices = @transform_5, window_bounds = array<i64: 1, 128>}]} {
    %c0 = arith.constant 0 : index
    %c0_0 = arith.constant 0 : index
    %0 = vector.load %arg1[%c0, %c0_0] : memref<128x128xf32, #tpu.memory_space<vmem>>, vector<128x128xf32>
    %1 = arith.truncf %0 : vector<128x128xf32> to vector<128x128xbf16>
    %c0_1 = arith.constant 0 : index
    %c0_2 = arith.constant 0 : index
    %2 = vector.load %arg2[%c0_1, %c0_2] : memref<128x64xbf16, #tpu.memory_space<vmem>>, vector<128x64xbf16>
    %cst = arith.constant dense<0.000000e+00> : vector<128x64xf32>
    %3 = tpu.matmul %1, %2, %cst {dimension_numbers = #tpu.dot_dimension_numbers<[1], [0], [0], [1], [0, 0, 1, 1], [], []>} : vector<128x128xbf16>, vector<128x64xbf16>, vector<128x64xf32> -> vector<128x64xf32>
    %c0_3 = arith.constant 0 : index
    %c0_4 = arith.constant 0 : index
    %4 = vector.load %arg3[%c0_3, %c0_4] : memref<1x64xf32, #tpu.memory_space<vmem>>, vector<1x64xf32>
    %5 = vector.broadcast %4 : vector<1x64xf32> to vector<128x64xf32>
    %6 = arith.addf %3, %5 : vector<128x64xf32>
    %cst_5 = arith.constant 0.000000e+00 : f32
    %7 = vector.broadcast %cst_5 : f32 to vector<128x64xf32>
    %8 = arith.maximumf %6, %7 : vector<128x64xf32>
    %9 = arith.truncf %8 : vector<128x64xf32> to vector<128x64xbf16>
    %c0_6 = arith.constant 0 : index
    %c0_7 = arith.constant 0 : index
    %10 = vector.load %arg4[%c0_6, %c0_7] : memref<1x64xbf16, #tpu.memory_space<vmem>>, vector<1x64xbf16>
    %cst_8 = arith.constant dense<0.000000e+00> : vector<1x128xf32>
    %11 = tpu.matmul %10, %9, %cst_8 {dimension_numbers = #tpu.dot_dimension_numbers<[1], [1], [0], [0], [0, 0, 1, 0], [], []>} : vector<1x64xbf16>, vector<128x64xbf16>, vector<1x128xf32> -> vector<1x128xf32>
    %c0_9 = arith.constant 0 : index
    %c0_10 = arith.constant 0 : index
    %12 = vector.load %arg5[%c0_9, %c0_10] : memref<1x1xf32, #tpu.memory_space<vmem>>, vector<1x1xf32>
    %13 = vector.broadcast %12 : vector<1x1xf32> to vector<1x128xf32>
    %14 = arith.addf %11, %13 : vector<1x128xf32>
    %c0_11 = arith.constant 0 : index
    %c0_12 = arith.constant 0 : index
    %15 = vector.load %arg6[%c0_11, %c0_12] : memref<1x128xf32, #tpu.memory_space<vmem>>, vector<1x128xf32>
    tpu.vector_store %arg6[%c0_11, %c0_12], %14 {strides = array<i32>} : memref<1x128xf32, #tpu.memory_space<vmem>>, vector<1x128xf32>,
    return
  }
  func.func @transform_0(%arg0: i32) -> (i32, i32) {
    %c0_i32 = arith.constant 0 : i32
    %c0_i32_0 = arith.constant 0 : i32
    return %arg0, %c0_i32 : i32, i32
  }
  func.func @transform_1(%arg0: i32) -> (i32, i32) {
    %c0_i32 = arith.constant 0 : i32
    %c0_i32_0 = arith.constant 0 : i32
    %c0_i32_1 = arith.constant 0 : i32
    return %c0_i32, %c0_i32_0 : i32, i32
  }
  func.func @transform_2(%arg0: i32) -> (i32, i32) {
    %c0_i32 = arith.constant 0 : i32
    %c0_i32_0 = arith.constant 0 : i32
    %c0_i32_1 = arith.constant 0 : i32
    return %c0_i32, %c0_i32_0 : i32, i32
  }
  func.func @transform_3(%arg0: i32) -> (i32, i32) {
    %c0_i32 = arith.constant 0 : i32
    %c0_i32_0 = arith.constant 0 : i32
    %c0_i32_1 = arith.constant 0 : i32
    return %c0_i32, %c0_i32_0 : i32, i32
  }
  func.func @transform_4(%arg0: i32) -> (i32, i32) {
    %c0_i32 = arith.constant 0 : i32
    %c0_i32_0 = arith.constant 0 : i32
    %c0_i32_1 = arith.constant 0 : i32
    return %c0_i32, %c0_i32_0 : i32, i32
  }
  func.func @transform_5(%arg0: i32) -> (i32, i32) {
    %c0_i32 = arith.constant 0 : i32
    %c0_i32_0 = arith.constant 0 : i32
    return %c0_i32, %arg0 : i32, i32
  }
}

</mosaic_0001>

<llo_original>
// kernel: tpu_custom_call.1
$region0: #{tpu_custom_call.1}
  #allocation0 [shape = 'u32[]', space=smem, size = 0x4, offset = 0x4, fixed_abs, tag = 'smem constant byte address 0x4 - core index']
  #allocation1 [shape = 'u32[144,128]{1,0:T(1,128)}', space=vmem, size = 0x12000, scoped, tag = 'internal scratch']
  #allocation2 [shape = 'f32[1,1]{1,0:T(1,128)S(1)}', space=vmem, size = 0x200, scoped, tag = 'scoped memory for tpu_custom_call.1']
  %s0 = inlined_call_operand.hbm [shape: f32[128,128], index: 0, kind: input, shape index: {}]
  %s1 = inlined_call_operand.vmem [shape: bf16[128,64], index: 1, kind: input, shape index: {}]
  %s2 = inlined_call_operand.vmem [shape: f32[1,64], index: 2, kind: input, shape index: {}]
  %s3 = inlined_call_operand.vmem [shape: bf16[1,64], index: 3, kind: input, shape index: {}]
  %s4 = inlined_call_operand.<no memory space> [shape: f32[1,1], index: 4, kind: input, shape index: {}]
  %s5 = inlined_call_operand.hbm [shape: f32[1,128], index: 5, kind: output, shape index: {}]
  %s6 = sld [smem:[#allocation0]]
  $region34: #{tpu_custom_call.1} parent=0
    _
  %s8 = ssub.s32 1, %s6
  %s9 = scalar_select 0, %s8, %s6
  %v10 = vstv %s4
  %11 = vst [vmem:[#allocation2] sm:$0x1] %v10
  $region1: #{tpu_custom_call.1} parent=0
    #allocation3 [shape = 'u8[65536]{0}', space=vmem, size = 0x10000, scoped, tag = 'input window, operand 0, single buffered']
    #allocation4 [shape = 's32[1]{0}', space=sflag, size = 0x4, scoped, tag = 'scoped memory for tpu_custom_call.1']
    #allocation5 [shape = 's32[1]{0}', space=sflag, size = 0x4, scoped, tag = 'scoped memory for tpu_custom_call.1']
    #allocation6 [shape = 'u8[512]{0}', space=vmem, size = 0x400, scoped, tag = 'output window, operand 0, single buffered']
    %12 = vsyncpa [#allocation4], 0
    %13 = vsyncpa [#allocation5], 0
    // Predicated region
    $region2: #{tpu_custom_call.1} parent=1 // pred_check
      _
    $region3: #{tpu_custom_call.1} parent=1 // pred_check_branch
      %15 = sbr.rel (0) target = $region5
    $region4: #{tpu_custom_call.1} parent=1 // pred_region
      %s17 = ssub.s32 2048, 2048
      %18 = vsyncadd [#allocation4], %s17
      %s19 = sshll.u32 [#allocation3], 4
      %s20 = int_to_ptr.vmem [resolvable:$true] %s19
      %25 = dma.hbm_to_vmem [thread:$0]  %s0, 2048, %s20, [#allocation4], 128, 128, 8
    $region5: #{tpu_custom_call.1} parent=1 // pred_fallthru
      _
    // Predicated region
    $region6: #{tpu_custom_call.1} parent=1 // pred_check
      _
    $region7: #{tpu_custom_call.1} parent=1 // pred_check_branch
      %27 = sbr.rel (0) target = $region9
    $region8: #{tpu_custom_call.1} parent=1 // pred_region
      _
    $region9: #{tpu_custom_call.1} parent=1 // pred_fallthru
      _
    // Predicated region
    $region10: #{tpu_custom_call.1} parent=1 // pred_check
      _
    $region11: #{tpu_custom_call.1} parent=1 // pred_check_branch
      %29 = sbr.rel (0) target = $region13
    $region12: #{tpu_custom_call.1} parent=1 // pred_region
      _
    $region13: #{tpu_custom_call.1} parent=1 // pred_fallthru
      _
    // Predicated region
    $region14: #{tpu_custom_call.1} parent=1 // pred_check
      _
    $region15: #{tpu_custom_call.1} parent=1 // pred_check_branch
      %31 = sbr.rel (0) target = $region17
    $region16: #{tpu_custom_call.1} parent=1 // pred_region
      _
    $region17: #{tpu_custom_call.1} parent=1 // pred_fallthru
      _
    // Predicated region
    $region18: #{tpu_custom_call.1} parent=1 // pred_check
      _
    $region19: #{tpu_custom_call.1} parent=1 // pred_check_branch
      %33 = sbr.rel (0) target = $region21
    $region20: #{tpu_custom_call.1} parent=1 // pred_region
      _
    $region21: #{tpu_custom_call.1} parent=1 // pred_fallthru
      _
    // Predicated region
    $region22: #{tpu_custom_call.1} parent=1 // pred_check
      _
    $region23: #{tpu_custom_call.1} parent=1 // pred_check_branch
      %35 = sbr.rel (0) target = $region25
    $region24: #{tpu_custom_call.1} parent=1 // pred_region
      %36 = dma.done [#allocation4], 2048
    $region25: #{tpu_custom_call.1} parent=1 // pred_fallthru
      _
    %v38 = vld [vmem:[#allocation3] sm:$0xff]
    %v39 = vld [vmem:[#allocation3 + $0x8] sm:$0xff]
    %v40 = vld [vmem:[#allocation3 + $0x10] sm:$0xff]
    %v41 = vld [vmem:[#allocation3 + $0x18] sm:$0xff]
    %v42 = vld [vmem:[#allocation3 + $0x20] sm:$0xff]
    %v43 = vld [vmem:[#allocation3 + $0x28] sm:$0xff]
    %v44 = vld [vmem:[#allocation3 + $0x30] sm:$0xff]
    %v45 = vld [vmem:[#allocation3 + $0x38] sm:$0xff]
    %v46 = vld [vmem:[#allocation3 + $0x40] sm:$0xff]
    %v47 = vld [vmem:[#allocation3 + $0x48] sm:$0xff]
    %v48 = vld [vmem:[#allocation3 + $0x50] sm:$0xff]
    %v49 = vld [vmem:[#allocation3 + $0x58] sm:$0xff]
    %v50 = vld [vmem:[#allocation3 + $0x60] sm:$0xff]
    %v51 = vld [vmem:[#allocation3 + $0x68] sm:$0xff]
    %v52 = vld [vmem:[#allocation3 + $0x70] sm:$0xff]
    %v53 = vld [vmem:[#allocation3 + $0x78] sm:$0xff]
    %v54 = vpack.c.bf16 %v39, %v38
    %v55 = vpack.c.bf16 %v41, %v40
    %v56 = vpack.c.bf16 %v43, %v42
    %v57 = vpack.c.bf16 %v45, %v44
    %v58 = vpack.c.bf16 %v47, %v46
    %v59 = vpack.c.bf16 %v49, %v48
    %v60 = vpack.c.bf16 %v51, %v50
    %v61 = vpack.c.bf16 %v53, %v52
    %v62 = vld [vmem:[%s1] sm:$0xf]
    %v63 = vld [vmem:[%s1 + $0x4] sm:$0xf]
    %v64 = vld [vmem:[%s1 + $0x8] sm:$0xf]
    %v65 = vld [vmem:[%s1 + $0xc] sm:$0xf]
    %v66 = vld [vmem:[%s1 + $0x10] sm:$0xf]
    %v67 = vld [vmem:[%s1 + $0x14] sm:$0xf]
    %v68 = vld [vmem:[%s1 + $0x18] sm:$0xf]
    %v69 = vld [vmem:[%s1 + $0x1c] sm:$0xf]
    %v70 = vld [vmem:[%s1 + $0x20] sm:$0xf]
    %v71 = vld [vmem:[%s1 + $0x24] sm:$0xf]
    %v72 = vld [vmem:[%s1 + $0x28] sm:$0xf]
    %v73 = vld [vmem:[%s1 + $0x2c] sm:$0xf]
    %v74 = vld [vmem:[%s1 + $0x30] sm:$0xf]
    %v75 = vld [vmem:[%s1 + $0x34] sm:$0xf]
    %v76 = vld [vmem:[%s1 + $0x38] sm:$0xf]
    %v77 = vld [vmem:[%s1 + $0x3c] sm:$0xf]
    %v78 = vld [vmem:[%s2] sm:$0x1]
    %v80 = vlaneseq
    %v81 = vshrl.u32 %v80, 7
    %v82 = vsub.s32 0, %v81
    %v83 = vrot.slane %v78, %v82
    %v101 = vunpack.c.l.b16 %v62
    %v102 = vunpack.c.l.b16 %v63
    %v103 = vunpack.c.l.b16 %v64
    %v104 = vunpack.c.l.b16 %v65
    %v105 = vunpack.c.l.b16 %v66
    %v106 = vunpack.c.l.b16 %v67
    %v107 = vunpack.c.l.b16 %v68
    %v108 = vunpack.c.l.b16 %v69
    %v109 = vunpack.c.l.b16 %v70
    %v110 = vunpack.c.l.b16 %v71
    %v111 = vunpack.c.l.b16 %v72
    %v112 = vunpack.c.l.b16 %v73
    %v113 = vunpack.c.l.b16 %v74
    %v114 = vunpack.c.l.b16 %v75
    %v115 = vunpack.c.l.b16 %v76
    %v116 = vunpack.c.l.b16 %v77
    %v117 = vpack.c.b16 %v102, %v101
    %v118 = vpack.c.b16 %v104, %v103
    %v119 = vpack.c.b16 %v106, %v105
    %v120 = vpack.c.b16 %v108, %v107
    %v121 = vpack.c.b16 %v110, %v109
    %v122 = vpack.c.b16 %v112, %v111
    %v123 = vpack.c.b16 %v114, %v113
    %v124 = vpack.c.b16 %v116, %v115
    %133 = vmatprep.subr.bf16.mxu0 0
    %134 = vmatpush1.bf16.msra.mxu0 %v117
    %135 = vmatprep.subr.bf16.mxu0 0
    %136 = vmatpush1.bf16.msra.mxu0 %v118
    %137 = vmatprep.subr.bf16.mxu0 0
    %138 = vmatpush1.bf16.msra.mxu0 %v119
    %139 = vmatprep.subr.bf16.mxu0 0
    %140 = vmatpush1.bf16.msra.mxu0 %v120
    %141 = vmatprep.subr.bf16.mxu0 0
    %142 = vmatpush1.bf16.msra.mxu0 %v121
    %143 = vmatprep.subr.bf16.mxu0 0
    %144 = vmatpush1.bf16.msra.mxu0 %v122
    %145 = vmatprep.subr.bf16.mxu0 0
    %146 = vmatpush1.bf16.msra.mxu0 %v123
    %147 = vmatprep.subr.bf16.mxu0 0
    %148 = vmatpush1.bf16.msra.mxu0 %v124
    %149 = vmatprep.subr.bf16.mxu0 0
    %150 = vmatpush1.bf16.msra.mxu0 0
    %151 = vmatprep.subr.bf16.mxu0 0
    %152 = vmatpush1.bf16.msra.mxu0 0
    %153 = vmatprep.subr.bf16.mxu0 0
    %154 = vmatpush1.bf16.msra.mxu0 0
    %155 = vmatprep.subr.bf16.mxu0 0
    %156 = vmatpush1.bf16.msra.mxu0 0
    %157 = vmatprep.subr.bf16.mxu0 0
    %158 = vmatpush1.bf16.msra.mxu0 0
    %159 = vmatprep.subr.bf16.mxu0 0
    %160 = vmatpush1.bf16.msra.mxu0 0
    %161 = vmatprep.subr.bf16.mxu0 0
    %162 = vmatpush1.bf16.msra.mxu0 0
    %163 = vmatprep.subr.bf16.mxu0 0
    %164 = vmatpush1.bf16.msra.mxu0 0
    %165 = vmatprep.mubr.bf16.mxu0 0
    %166 = vmatmul.mubr.bf16.gmra.mrb[0].mxu0 %v54
    %v167 = vpop.f32.mrb[0].mxu0
    %v168 = vadd.f32 %v83, %v167
    %v169 = vpop.f32.mrb[0].mxu0
    %v170 = vpop.f32.mrb[0].mxu0
    %v171 = vadd.f32 %v83, %v170
    %v172 = vpop.f32.mrb[0].mxu0
    %173 = vmatprep.mubr.bf16.mxu0 0
    %174 = vmatmul.mubr.bf16.gmra.mrb[0].mxu0 %v55
    %v175 = vpop.f32.mrb[0].mxu0
    %v176 = vadd.f32 %v83, %v175
    %v177 = vpop.f32.mrb[0].mxu0
    %v178 = vpop.f32.mrb[0].mxu0
    %v179 = vadd.f32 %v83, %v178
    %v180 = vpop.f32.mrb[0].mxu0
    %181 = vmatprep.mubr.bf16.mxu0 0
    %182 = vmatmul.mubr.bf16.gmra.mrb[0].mxu0 %v56
    %v183 = vpop.f32.mrb[0].mxu0
    %v184 = vadd.f32 %v83, %v183
    %v185 = vpop.f32.mrb[0].mxu0
    %v186 = vpop.f32.mrb[0].mxu0
    %v187 = vadd.f32 %v83, %v186
    %v188 = vpop.f32.mrb[0].mxu0
    %189 = vmatprep.mubr.bf16.mxu0 0
    %190 = vmatmul.mubr.bf16.gmra.mrb[0].mxu0 %v57
    %v191 = vpop.f32.mrb[0].mxu0
    %v192 = vadd.f32 %v83, %v191
    %v193 = vpop.f32.mrb[0].mxu0
    %v194 = vpop.f32.mrb[0].mxu0
    %v195 = vadd.f32 %v83, %v194
    %v196 = vpop.f32.mrb[0].mxu0
    %197 = vmatprep.mubr.bf16.mxu0 0
    %198 = vmatmul.mubr.bf16.gmra.mrb[0].mxu0 %v58
    %v199 = vpop.f32.mrb[0].mxu0
    %v200 = vadd.f32 %v83, %v199
    %v201 = vpop.f32.mrb[0].mxu0
    %v202 = vpop.f32.mrb[0].mxu0
    %v203 = vadd.f32 %v83, %v202
    %v204 = vpop.f32.mrb[0].mxu0
    %205 = vmatprep.mubr.bf16.mxu0 0
    %206 = vmatmul.mubr.bf16.gmra.mrb[0].mxu0 %v59
    %v207 = vpop.f32.mrb[0].mxu0
    %v208 = vadd.f32 %v83, %v207
    %v209 = vpop.f32.mrb[0].mxu0
    %v210 = vpop.f32.mrb[0].mxu0
    %v211 = vadd.f32 %v83, %v210
    %v212 = vpop.f32.mrb[0].mxu0
    %213 = vmatprep.mubr.bf16.mxu0 0
    %214 = vmatmul.mubr.bf16.gmra.mrb[0].mxu0 %v60
    %v215 = vpop.f32.mrb[0].mxu0
    %v216 = vadd.f32 %v83, %v215
    %v217 = vpop.f32.mrb[0].mxu0
    %v218 = vpop.f32.mrb[0].mxu0
    %v219 = vadd.f32 %v83, %v218
    %v220 = vpop.f32.mrb[0].mxu0
    %221 = vmatprep.mubr.bf16.mxu0 0
    %222 = vmatmul.mubr.bf16.gmra.mrb[0].mxu0 %v61
    %v223 = vpop.f32.mrb[0].mxu0
    %v224 = vadd.f32 %v83, %v223
    %v225 = vpop.f32.mrb[0].mxu0
    %v226 = vpop.f32.mrb[0].mxu0
    %v227 = vadd.f32 %v83, %v226
    %v228 = vpop.f32.mrb[0].mxu0
    %229 = vdwg.mxu0
    %v230 = vmax.f32 %v168, 0.0
    %v231 = vmax.f32 %v171, 0.0
    %v232 = vmax.f32 %v176, 0.0
    %v233 = vmax.f32 %v179, 0.0
    %v234 = vmax.f32 %v184, 0.0
    %v235 = vmax.f32 %v187, 0.0
    %v236 = vmax.f32 %v192, 0.0
    %v237 = vmax.f32 %v195, 0.0
    %v238 = vmax.f32 %v200, 0.0
    %v239 = vmax.f32 %v203, 0.0
    %v240 = vmax.f32 %v208, 0.0
    %v241 = vmax.f32 %v211, 0.0
    %v242 = vmax.f32 %v216, 0.0
    %v243 = vmax.f32 %v219, 0.0
    %v244 = vmax.f32 %v224, 0.0
    %v245 = vmax.f32 %v227, 0.0
    %v246 = vpack.c.bf16 %v231, %v230
    %v247 = vpack.c.bf16 %v233, %v232
    %v248 = vpack.c.bf16 %v235, %v234
    %v249 = vpack.c.bf16 %v237, %v236
    %v250 = vpack.c.bf16 %v239, %v238
    %v251 = vpack.c.bf16 %v241, %v240
    %v252 = vpack.c.bf16 %v243, %v242
    %v253 = vpack.c.bf16 %v245, %v244
    %v254 = vld [vmem:[%s3] sm:$0x1]
    %v255 = vld [vmem:[#allocation2] sm:$0x1]
    %257 = vset.pattern.permute.xlu0 0
    %258 = vperm.xlu0 %257, %v255
    %v259 = vpop.permute.xlu0 %258
    %v261 = vlaneseq
    %v262 = vshrl.u32 %v261, 7
    %v263 = vsub.s32 0, %v262
    %v264 = vrot.slane %v259, %v263
    %vm265 = vcmask 523264
    %v267 = vsel %vm265, %v254, 0
    %v270 = vsel %vm265, %v246, 0
    %v273 = vsel %vm265, %v247, 0
    %v276 = vsel %vm265, %v248, 0
    %v279 = vsel %vm265, %v249, 0
    %v282 = vsel %vm265, %v250, 0
    %v285 = vsel %vm265, %v251, 0
    %v288 = vsel %vm265, %v252, 0
    %v291 = vsel %vm265, %v253, 0
    %293 = vmatprep.subr.bf16.mxu0 0
    %294 = vmatpush1.bf16.xpose.msra.mxu0 %v270
    %295 = vmatprep.subr.bf16.mxu0 0
    %296 = vmatpush1.bf16.xpose.msra.mxu0 %v273
    %297 = vmatprep.subr.bf16.mxu0 0
    %298 = vmatpush1.bf16.xpose.msra.mxu0 %v276
    %299 = vmatprep.subr.bf16.mxu0 0
    %300 = vmatpush1.bf16.xpose.msra.mxu0 %v279
    %301 = vmatprep.subr.bf16.mxu0 0
    %302 = vmatpush1.bf16.xpose.msra.mxu0 %v282
    %303 = vmatprep.subr.bf16.mxu0 0
    %304 = vmatpush1.bf16.xpose.msra.mxu0 %v285
    %305 = vmatprep.subr.bf16.mxu0 0
    %306 = vmatpush1.bf16.xpose.msra.mxu0 %v288
    %307 = vmatprep.subr.bf16.mxu0 0
    %308 = vmatpush1.bf16.xpose.msra.mxu0 %v291
    %309 = vmatprep.subr.bf16.mxu0 0
    %310 = vmatpush1.bf16.xpose.msra.mxu0 0
    %311 = vmatprep.subr.bf16.mxu0 0
    %312 = vmatpush1.bf16.xpose.msra.mxu0 0
    %313 = vmatprep.subr.bf16.mxu0 0
    %314 = vmatpush1.bf16.xpose.msra.mxu0 0
    %315 = vmatprep.subr.bf16.mxu0 0
    %316 = vmatpush1.bf16.xpose.msra.mxu0 0
    %317 = vmatprep.subr.bf16.mxu0 0
    %318 = vmatpush1.bf16.xpose.msra.mxu0 0
    %319 = vmatprep.subr.bf16.mxu0 0
    %320 = vmatpush1.bf16.xpose.msra.mxu0 0
    %321 = vmatprep.subr.bf16.mxu0 0
    %322 = vmatpush1.bf16.xpose.msra.mxu0 0
    %323 = vmatprep.subr.bf16.mxu0 0
    %324 = vmatpush1.bf16.xpose.msra.mxu0 0
    %325 = vmatprep.mubr.bf16.mxu0 0
    %326 = vmatmul.mubr.bf16.gmra.mrb[0].mxu0 %v267
    %v327 = vpop.f32.mrb[0].mxu0
    %v328 = vadd.f32 %v264, %v327
    %v329 = vpop.f32.mrb[0].mxu0
    %v330 = vpop.f32.mrb[0].mxu0
    %v331 = vpop.f32.mrb[0].mxu0
    %332 = vdwg.mxu0
    %333 = vst [vmem:[#allocation6] sm:$0x1] %v328
    // Predicated region
    $region26: #{tpu_custom_call.1} parent=1 // pred_check
      _
    $region27: #{tpu_custom_call.1} parent=1 // pred_check_branch
      %335 = sbr.rel (0) target = $region29
    $region28: #{tpu_custom_call.1} parent=1 // pred_region
      %s337 = ssub.s32 16, 16
      %338 = vsyncadd [#allocation5], %s337
      %s340 = sshll.u32 [#allocation6], 4
      %s341 = int_to_ptr.vmem [resolvable:$true] %s340
      %343 = dma.vmem_to_hbm [thread:$0]  %s341, 16, %s5, [#allocation5]
    $region29: #{tpu_custom_call.1} parent=1 // pred_fallthru
      _
    // Predicated region
    $region30: #{tpu_custom_call.1} parent=1 // pred_check
      _
    $region31: #{tpu_custom_call.1} parent=1 // pred_check_branch
      %345 = sbr.rel (0) target = $region33
    $region32: #{tpu_custom_call.1} parent=1 // pred_region
      %346 = dma.done [#allocation5], 16
    $region33: #{tpu_custom_call.1} parent=1 // pred_fallthru
      _
    %347 = vsyncpa [#allocation4], 1
    %348 = vsyncpa [#allocation5], 1

</llo_original>
